<compile_context>
chip_gen: v7x
topology: tpu7x:2x2x1
jax: 0.10.0
libtpu: 0.0.40
codegen_flags: <defaults>
</compile_context>

<pallas_src>
import numpy as np
import jax
import jax.numpy as jnp
from jax.experimental import pallas as pl
from jax.experimental.pallas import tpu as pltpu

BN_EPS = 1e-5
VMEM_LIMIT = 32 * 1024 * 1024


# ----------------------------- Pallas kernels -----------------------------

def _make_mm_kernel(activation, has_residual, mean_out):
    """y = act(x @ w_folded + bias [+ residual]); optional channel-mean output."""
    def kernel(*refs):
        if has_residual:
            x_ref, w_ref, b_ref, r_ref, *outs = refs
        else:
            x_ref, w_ref, b_ref, *outs = refs
            r_ref = None
        acc = jnp.dot(x_ref[...], w_ref[...],
                      preferred_element_type=jnp.float32)
        acc = acc + b_ref[...]
        if has_residual:
            acc = acc + r_ref[...].astype(jnp.float32)
        if activation == "relu":
            acc = jnp.maximum(acc, 0.0)
        outs[0][...] = acc.astype(outs[0].dtype)
        if mean_out:
            # channel mean of the (post-activation) f32 accumulator
            outs[1][...] = jnp.mean(acc, axis=-1, keepdims=True).astype(
                outs[1].dtype)
    return kernel


def fused_matmul(x, w_folded, bias, residual=None, activation="none",
                 mean_out=False, out_dtype=jnp.bfloat16):
    """Fused matmul + bias (+ residual) (+ relu) (+ channel-mean extra output).

    bf16 operands, f32 accumulation/epilogue. Grid: (M tiles, Cout tiles),
    both 'parallel' (no reduction axis: K is kept whole in VMEM).
    """
    M, K = x.shape
    Kw, Nc = w_folded.shape
    assert K == Kw

    if M <= 512:
        TM = M
    elif M % 512 == 0:
        TM = 512
    elif M % 128 == 0:
        TM = 128
    else:
        TM = M

    if mean_out or Nc <= 128 or Nc % 128 != 0:
        TN = Nc                       # full channel set needed / small Cout
    else:
        TN = 128                      # Cout-parallel tiles (v7x megacore)

    grid = (M // TM, Nc // TN)
    bias = bias.reshape(1, Nc).astype(jnp.float32)

    in_specs = [
        pl.BlockSpec((TM, K), lambda i, j: (i, 0)),
        pl.BlockSpec((K, TN), lambda i, j: (0, j)),
        pl.BlockSpec((1, TN), lambda i, j: (0, j)),
    ]
    args = [x.astype(jnp.bfloat16), w_folded.astype(jnp.bfloat16), bias]
    if residual is not None:
        in_specs.append(pl.BlockSpec((TM, TN), lambda i, j: (i, j)))
        args.append(residual.reshape(M, Nc).astype(jnp.bfloat16))

    out_shapes = [jax.ShapeDtypeStruct((M, Nc), out_dtype)]
    out_specs = [pl.BlockSpec((TM, TN), lambda i, j: (i, j))]
    if mean_out:
        out_shapes.append(jax.ShapeDtypeStruct((M, 1), jnp.float32))
        out_specs.append(pl.BlockSpec((TM, 1), lambda i, j: (i, 0)))

    result = pl.pallas_call(
        _make_mm_kernel(activation, residual is not None, mean_out),
        out_shape=tuple(out_shapes) if mean_out else out_shapes[0],
        grid=grid,
        in_specs=in_specs,
        out_specs=tuple(out_specs) if mean_out else out_specs[0],
        compiler_params=pltpu.CompilerParams(
            dimension_semantics=("parallel", "parallel"),
            vmem_limit_bytes=VMEM_LIMIT,
        ),
    )(*args)
    return result


def _tail_kernel(p_ref, fw_ref, fb_ref, ow_ref, ob_ref, o_ref):
    # p_ref: (N, Ho*Wo, K*K, C). MaxPool over the window, adaptive-average over
    # the remaining positions, then feature_fc -> output_fc -> softmax, all in
    # one kernel (everything stays resident in VMEM).
    m = jnp.max(p_ref[...], axis=2)                 # (N, HoWo, C)
    pooled = jnp.mean(m, axis=1)                    # (N, C)
    feats = jnp.dot(pooled, fw_ref[...],
                    preferred_element_type=jnp.float32) + fb_ref[...]
    logits = jnp.dot(feats, ow_ref[...],
                     preferred_element_type=jnp.float32) + ob_ref[...]
    mx = jnp.max(logits, axis=-1, keepdims=True)
    e = jnp.exp(logits - mx)
    denom = jnp.sum(e, axis=-1, keepdims=True)
    o_ref[...] = (e * pl.reciprocal(denom, approx=True)).astype(o_ref.dtype)


def fused_tail(x, fw, fb, ow, ob, k=3, stride=2, pad=1):
    """MaxPool2d(3,2,1) + AdaptiveAvgPool2d((1,1)) + feature_fc + output_fc + softmax."""
    N, H, W, C = x.shape
    Ho = (H + 2 * pad - k) // stride + 1
    Wo = (W + 2 * pad - k) // stride + 1
    xp = jnp.pad(x.astype(jnp.float32),
                 ((0, 0), (pad, pad), (pad, pad), (0, 0)),
                 constant_values=-jnp.inf)          # maxpool ignores padding
    pats = []
    for i in range(k):
        for j in range(k):
            pats.append(xp[:, i:i + (Ho - 1) * stride + 1:stride,
                           j:j + (Wo - 1) * stride + 1:stride, :])
    p = jnp.stack(pats, axis=3).reshape(N, Ho * Wo, k * k, C)

    F1 = fw.shape[1]
    F2 = ow.shape[1]
    return pl.pallas_call(
        _tail_kernel,
        out_shape=jax.ShapeDtypeStruct((N, F2), jnp.float32),
        grid=(1,),
        in_specs=[
            pl.BlockSpec((N, Ho * Wo, k * k, C), lambda i: (0, 0, 0, 0)),
            pl.BlockSpec((C, F1), lambda i: (0, 0)),
            pl.BlockSpec((1, F1), lambda i: (0, 0)),
            pl.BlockSpec((F1, F2), lambda i: (0, 0)),
            pl.BlockSpec((1, F2), lambda i: (0, 0)),
        ],
        out_specs=pl.BlockSpec((N, F2), lambda i: (0, 0)),
        compiler_params=pltpu.CompilerParams(vmem_limit_bytes=VMEM_LIMIT),
    )(p,
      fw.astype(jnp.float32), fb.reshape(1, F1).astype(jnp.float32),
      ow.astype(jnp.float32), ob.reshape(1, F2).astype(jnp.float32))


# ------------------------------ Conv helpers ------------------------------

def im2col(x, kh, kw, stride, pad):
    """x: (N, H, W, C) -> (N*Ho*Wo, kh*kw*C) patches (zero padding), bf16."""
    # TODO(synk): patch extraction is still materialized by XLA (not fused into
    # the Pallas kernel); it is carried in bf16 to halve the HBM round-trip.
    N, H, W, C = x.shape
    Ho = (H + 2 * pad - kh) // stride + 1
    Wo = (W + 2 * pad - kw) // stride + 1
    xp = jnp.pad(x, ((0, 0), (pad, pad), (pad, pad), (0, 0)))
    cols = []
    for i in range(kh):
        for j in range(kw):
            cols.append(xp[:, i:i + (Ho - 1) * stride + 1:stride,
                           j:j + (Wo - 1) * stride + 1:stride, :])
    p = jnp.stack(cols, axis=3)  # (N, Ho, Wo, kh*kw, C)
    return p.reshape(N * Ho * Wo, kh * kw * C).astype(jnp.bfloat16), Ho, Wo


def conv_bn(x, w, scale, bias, stride, pad, activation="none", residual=None,
            mean_out=False):
    """Conv2d (no bias) + folded BatchNorm (+ residual add) (+ activation)."""
    N = x.shape[0]
    KH, KW, Cin, Cout = w.shape
    patches, Ho, Wo = im2col(x, KH, KW, stride, pad)
    # Fold BN scale into the weight matrix; only the bias goes to the epilogue.
    wmat = (w.reshape(KH * KW * Cin, Cout)
            * scale.reshape(1, Cout)).astype(jnp.bfloat16)
    res = None if residual is None else residual.reshape(N * Ho * Wo, Cout)
    out = fused_matmul(patches, wmat, bias, residual=res,
                       activation=activation, mean_out=mean_out)
    if mean_out:
        y, mvec = out
        return y.reshape(N, Ho, Wo, Cout), mvec
    return out.reshape(N, Ho, Wo, Cout)


# ------------------------------ Parameters --------------------------------

def _bn_fold(gamma, beta, mean, var):
    scale = gamma / jnp.sqrt(var + BN_EPS)
    return scale, beta - mean * scale


def _init_bn(c):
    # PyTorch BatchNorm2d defaults: weight=1, bias=0, running_mean=0, running_var=1
    return _bn_fold(jnp.ones((c,), jnp.float32), jnp.zeros((c,), jnp.float32),
                    jnp.zeros((c,), jnp.float32), jnp.ones((c,), jnp.float32))


def _init_conv(key, kh, kw, cin, cout):
    fan_in = kh * kw * cin
    return (jax.random.normal(key, (kh, kw, cin, cout), jnp.float32)
            / np.sqrt(fan_in))


def _init_linear(key, fin, fout):
    k1, k2 = jax.random.split(key)
    bound = 1.0 / np.sqrt(fin)
    w = jax.random.uniform(k1, (fin, fout), jnp.float32, -bound, bound)
    b = jax.random.uniform(k2, (fout,), jnp.float32, -bound, bound)
    return w, b


def init_params(key):
    keys = iter(jax.random.split(key, 32))
    p = {"conv1_w": _init_conv(next(keys), 7, 7, 1, 64), "bn1": _init_bn(64)}
    in_c = 64
    layer_cfg = [(64, 1, 1), (128, 1, 2), (256, 1, 2), (512, 1, 2)]  # layers=[1,1,1,1]
    p["layers"] = []
    for out_c, nblocks, stride in layer_cfg:
        blocks = []
        for bi in range(nblocks):
            s = stride if bi == 0 else 1
            blk = {
                "w1": _init_conv(next(keys), 3, 3, in_c, out_c),
                "bn_1": _init_bn(out_c),
                "w2": _init_conv(next(keys), 3, 3, out_c, out_c),
                "bn_2": _init_bn(out_c),
                "stride": s,
            }
            if s != 1 or in_c != out_c:  # downsample branch (1x1 conv + BN)
                blk["wd"] = _init_conv(next(keys), 1, 1, in_c, out_c)
                blk["bn_d"] = _init_bn(out_c)
            blocks.append(blk)
            in_c = out_c
        p["layers"].append(blocks)
    p["feature_fc"] = _init_linear(next(keys), 512, 128)   # 512 * expansion(=1)
    p["output_fc"] = _init_linear(next(keys), 128, 256)
    return p


# ------------------------------ Forward pass -------------------------------

def basic_block(x, blk):
    s1, b1 = blk["bn_1"]
    s2, b2 = blk["bn_2"]
    h = conv_bn(x, blk["w1"], s1, b1, blk["stride"], 1, activation="relu")
    if "wd" in blk:
        sd, bd = blk["bn_d"]
        identity = conv_bn(x, blk["wd"], sd, bd, blk["stride"], 0)
    else:
        identity = x
    # out = relu(bn2(conv2(h)) + identity), residual-add fused in the kernel
    return conv_bn(h, blk["w2"], s2, b2, 1, 1,
                   activation="relu", residual=identity)


def resnet_forward(x_nchw, p):
    # NCHW -> NHWC, bf16 activations through the conv path
    x = jnp.transpose(x_nchw, (0, 2, 3, 1)).astype(jnp.bfloat16)
    N = x.shape[0]

    s1, b1 = p["bn1"]
    # conv1 + BN + ReLU with features0 (channel mean) fused in the epilogue
    x, mvec = conv_bn(x, p["conv1_w"], s1, b1, stride=2, pad=3,
                      activation="relu", mean_out=True)
    _, H1, W1, _ = x.shape
    features0 = mvec.reshape(N, H1 * W1)

    # TODO(synk): Dropout(p=0.2) and batch-stat BatchNorm (training mode) are
    # not reproduced; inference-mode semantics used (dropout=identity, BN uses
    # running stats folded into weights/bias).
    for blocks in p["layers"]:
        for blk in blocks:
            x = basic_block(x, blk)

    # maxpool + avgpool + feature_fc + output_fc + softmax, one fused kernel
    fw, fb = p["feature_fc"]
    ow, ob = p["output_fc"]
    output = fused_tail(x, fw, fb, ow, ob)
    return features0, output


# ---------------------------------- Main -----------------------------------

if __name__ == "__main__":
    key = jax.random.PRNGKey(0)
    pkey, xkey = jax.random.split(key)
    params = init_params(pkey)

    # PyTorch-style NCHW input: (batch=2, channels=1, 32, 32)
    x = jax.random.normal(xkey, (2, 1, 32, 32), jnp.float32)

    feats0, out = resnet_forward(x, params)
    jax.block_until_ready((feats0, out))

    assert feats0.shape == (2, 16 * 16), feats0.shape
    assert out.shape == (2, 256), out.shape
    assert bool(jnp.all(jnp.isfinite(out)))
    # softmax rows sum to ~1 (approx reciprocal used for the normalization)
    assert abs(float(out.sum()) - 2.0) < 5e-3

    print("KERNEL_OK")
</pallas_src>

<mosaic_0001>
module attributes {stable_mosaic.version = 11 : i64} {
  func.func @kernel(%arg0: i32, %arg1: i32, %arg2: memref<512x49xbf16, #tpu.memory_space<vmem>>, %arg3: memref<49x64xbf16, #tpu.memory_space<vmem>>, %arg4: memref<1x64xf32, #tpu.memory_space<vmem>>, %arg5: memref<512x64xbf16, #tpu.memory_space<vmem>>, %arg6: memref<512x1xf32, #tpu.memory_space<vmem>>) attributes {dimension_semantics = [#tpu.dimension_semantics<parallel>, #tpu.dimension_semantics<parallel>], iteration_bounds = array<i64: 1, 1>, scalar_prefetch = 0 : i64, scratch_operands = 0 : i64, tpu.core_type = #tpu.core_type<tc>, window_params = [{transform_indices = @transform_0, window_bounds = array<i64: 512, 49>}, {transform_indices = @transform_1, window_bounds = array<i64: 49, 64>}, {transform_indices = @transform_2, window_bounds = array<i64: 1, 64>}, {transform_indices = @transform_3, window_bounds = array<i64: 512, 64>}, {transform_indices = @transform_4, window_bounds = array<i64: 512, 1>}]} {
    %c0 = arith.constant 0 : index
    %c0_0 = arith.constant 0 : index
    %0 = vector.load %arg2[%c0, %c0_0] : memref<512x49xbf16, #tpu.memory_space<vmem>>, vector<512x49xbf16>
    %c0_1 = arith.constant 0 : index
    %c0_2 = arith.constant 0 : index
    %1 = vector.load %arg3[%c0_1, %c0_2] : memref<49x64xbf16, #tpu.memory_space<vmem>>, vector<49x64xbf16>
    %cst = arith.constant dense<0.000000e+00> : vector<512x64xf32>
    %2 = tpu.matmul %0, %1, %cst {dimension_numbers = #tpu.dot_dimension_numbers<[1], [0], [0], [1], [0, 0, 1, 1], [], []>} : vector<512x49xbf16>, vector<49x64xbf16>, vector<512x64xf32> -> vector<512x64xf32>
    %c0_3 = arith.constant 0 : index
    %c0_4 = arith.constant 0 : index
    %3 = vector.load %arg4[%c0_3, %c0_4] : memref<1x64xf32, #tpu.memory_space<vmem>>, vector<1x64xf32>
    %4 = vector.broadcast %3 : vector<1x64xf32> to vector<512x64xf32>
    %5 = arith.addf %2, %4 : vector<512x64xf32>
    %cst_5 = arith.constant 0.000000e+00 : f32
    %6 = vector.broadcast %cst_5 : f32 to vector<512x64xf32>
    %7 = arith.maximumf %5, %6 : vector<512x64xf32>
    %8 = arith.truncf %7 : vector<512x64xf32> to vector<512x64xbf16>
    %c0_6 = arith.constant 0 : index
    %c0_7 = arith.constant 0 : index
    %9 = vector.load %arg5[%c0_6, %c0_7] : memref<512x64xbf16, #tpu.memory_space<vmem>>, vector<512x64xbf16>
    tpu.vector_store %arg5[%c0_6, %c0_7], %8 {strides = array<i32>} : memref<512x64xbf16, #tpu.memory_space<vmem>>, vector<512x64xbf16>,
    %cst_8 = arith.constant dense<0.000000e+00> : vector<512xf32>
    %10 = vector.multi_reduction <add>, %7, %cst_8 [1] : vector<512x64xf32> to vector<512xf32>
    %11 = vector.shape_cast %10 : vector<512xf32> to vector<512x1xf32>
    %cst_9 = arith.constant 6.400000e+01 : f32
    %12 = vector.broadcast %cst_9 : f32 to vector<512x1xf32>
    %13 = arith.divf %11, %12 : vector<512x1xf32>
    %c0_10 = arith.constant 0 : index
    %c0_11 = arith.constant 0 : index
    %14 = vector.load %arg6[%c0_10, %c0_11] : memref<512x1xf32, #tpu.memory_space<vmem>>, vector<512x1xf32>
    tpu.vector_store %arg6[%c0_10, %c0_11], %13 {strides = array<i32>} : memref<512x1xf32, #tpu.memory_space<vmem>>, vector<512x1xf32>,
    return
  }
  func.func @transform_0(%arg0: i32, %arg1: i32) -> (i32, i32) {
    %c0_i32 = arith.constant 0 : i32
    %c0_i32_0 = arith.constant 0 : i32
    return %arg0, %c0_i32 : i32, i32
  }
  func.func @transform_1(%arg0: i32, %arg1: i32) -> (i32, i32) {
    %c0_i32 = arith.constant 0 : i32
    %c0_i32_0 = arith.constant 0 : i32
    return %c0_i32, %arg1 : i32, i32
  }
  func.func @transform_2(%arg0: i32, %arg1: i32) -> (i32, i32) {
    %c0_i32 = arith.constant 0 : i32
    %c0_i32_0 = arith.constant 0 : i32
    return %c0_i32, %arg1 : i32, i32
  }
  func.func @transform_3(%arg0: i32, %arg1: i32) -> (i32, i32) {
    %c0_i32 = arith.constant 0 : i32
    return %arg0, %arg1 : i32, i32
  }
  func.func @transform_4(%arg0: i32, %arg1: i32) -> (i32, i32) {
    %c0_i32 = arith.constant 0 : i32
    %c0_i32_0 = arith.constant 0 : i32
    return %arg0, %c0_i32 : i32, i32
  }
}

</mosaic_0001>

<llo_original>
// kernel: tpu_custom_call.1
$region0: #{tpu_custom_call.1}
  #allocation0 [shape = 'u32[]', space=smem, size = 0x4, offset = 0x4, fixed_abs, tag = 'smem constant byte address 0x4 - core index']
  #allocation1 [shape = 'u32[144,128]{1,0:T(1,128)}', space=vmem, size = 0x12000, scoped, tag = 'internal scratch']
  %s0 = inlined_call_operand.vmem [shape: bf16[512,49], index: 0, kind: input, shape index: {}]
  %s1 = inlined_call_operand.vmem [shape: bf16[49,64], index: 1, kind: input, shape index: {}]
  %s2 = inlined_call_operand.vmem [shape: f32[1,64], index: 2, kind: input, shape index: {}]
  %s3 = inlined_call_operand.vmem [shape: bf16[512,64], index: 3, kind: output, shape index: {0}]
  %s4 = inlined_call_operand.vmem [shape: f32[512,1], index: 4, kind: output, shape index: {1}]
  %5 = xla_tuple %s3, %s4
  %s6 = sld [smem:[#allocation0]]
  $region30: #{tpu_custom_call.1} parent=0
    _
  %s8 = ssub.s32 1, %s6
  %s9 = scalar_select 0, %s8, %s6
  // Predicated region
  $region2: #{tpu_custom_call.1} parent=0 // pred_check
    _
  $region3: #{tpu_custom_call.1} parent=0 // pred_check_branch
    %11 = sbr.rel (0) target = $region5
  $region4: #{tpu_custom_call.1} parent=0 // pred_region
    _
  $region5: #{tpu_custom_call.1} parent=0 // pred_fallthru
    _
  // Predicated region
  $region6: #{tpu_custom_call.1} parent=0 // pred_check
    _
  $region7: #{tpu_custom_call.1} parent=0 // pred_check_branch
    %13 = sbr.rel (0) target = $region9
  $region8: #{tpu_custom_call.1} parent=0 // pred_region
    _
  $region9: #{tpu_custom_call.1} parent=0 // pred_fallthru
    _
  // Predicated region
  $region10: #{tpu_custom_call.1} parent=0 // pred_check
    _
  $region11: #{tpu_custom_call.1} parent=0 // pred_check_branch
    %15 = sbr.rel (0) target = $region13
  $region12: #{tpu_custom_call.1} parent=0 // pred_region
    _
  $region13: #{tpu_custom_call.1} parent=0 // pred_fallthru
    _
  %v17 = vld [vmem:[%s0] sm:$0xf]
  %v18 = vld [vmem:[%s0 + $0x4] sm:$0xf]
  %v19 = vld [vmem:[%s0 + $0x8] sm:$0xf]
  %v20 = vld [vmem:[%s0 + $0xc] sm:$0xf]
  %v21 = vld [vmem:[%s0 + $0x10] sm:$0xf]
  %v22 = vld [vmem:[%s0 + $0x14] sm:$0xf]
  %v23 = vld [vmem:[%s0 + $0x18] sm:$0xf]
  %v24 = vld [vmem:[%s0 + $0x1c] sm:$0xf]
  %v25 = vld [vmem:[%s0 + $0x20] sm:$0xf]
  %v26 = vld [vmem:[%s0 + $0x24] sm:$0xf]
  %v27 = vld [vmem:[%s0 + $0x28] sm:$0xf]
  %v28 = vld [vmem:[%s0 + $0x2c] sm:$0xf]
  %v29 = vld [vmem:[%s0 + $0x30] sm:$0xf]
  %v30 = vld [vmem:[%s0 + $0x34] sm:$0xf]
  %v31 = vld [vmem:[%s0 + $0x38] sm:$0xf]
  %v32 = vld [vmem:[%s0 + $0x3c] sm:$0xf]
  %v33 = vld [vmem:[%s0 + $0x40] sm:$0xf]
  %v34 = vld [vmem:[%s0 + $0x44] sm:$0xf]
  %v35 = vld [vmem:[%s0 + $0x48] sm:$0xf]
  %v36 = vld [vmem:[%s0 + $0x4c] sm:$0xf]
  %v37 = vld [vmem:[%s0 + $0x50] sm:$0xf]
  %v38 = vld [vmem:[%s0 + $0x54] sm:$0xf]
  %v39 = vld [vmem:[%s0 + $0x58] sm:$0xf]
  %v40 = vld [vmem:[%s0 + $0x5c] sm:$0xf]
  %v41 = vld [vmem:[%s0 + $0x60] sm:$0xf]
  %v42 = vld [vmem:[%s0 + $0x64] sm:$0xf]
  %v43 = vld [vmem:[%s0 + $0x68] sm:$0xf]
  %v44 = vld [vmem:[%s0 + $0x6c] sm:$0xf]
  %v45 = vld [vmem:[%s0 + $0x70] sm:$0xf]
  %v46 = vld [vmem:[%s0 + $0x74] sm:$0xf]
  %v47 = vld [vmem:[%s0 + $0x78] sm:$0xf]
  %v48 = vld [vmem:[%s0 + $0x7c] sm:$0xf]
  %v49 = vld [vmem:[%s0 + $0x80] sm:$0xf]
  %v50 = vld [vmem:[%s0 + $0x84] sm:$0xf]
  %v51 = vld [vmem:[%s0 + $0x88] sm:$0xf]
  %v52 = vld [vmem:[%s0 + $0x8c] sm:$0xf]
  %v53 = vld [vmem:[%s0 + $0x90] sm:$0xf]
  %v54 = vld [vmem:[%s0 + $0x94] sm:$0xf]
  %v55 = vld [vmem:[%s0 + $0x98] sm:$0xf]
  %v56 = vld [vmem:[%s0 + $0x9c] sm:$0xf]
  %v57 = vld [vmem:[%s0 + $0xa0] sm:$0xf]
  %v58 = vld [vmem:[%s0 + $0xa4] sm:$0xf]
  %v59 = vld [vmem:[%s0 + $0xa8] sm:$0xf]
  %v60 = vld [vmem:[%s0 + $0xac] sm:$0xf]
  %v61 = vld [vmem:[%s0 + $0xb0] sm:$0xf]
  %v62 = vld [vmem:[%s0 + $0xb4] sm:$0xf]
  %v63 = vld [vmem:[%s0 + $0xb8] sm:$0xf]
  %v64 = vld [vmem:[%s0 + $0xbc] sm:$0xf]
  %v65 = vld [vmem:[%s0 + $0xc0] sm:$0xf]
  %v66 = vld [vmem:[%s0 + $0xc4] sm:$0xf]
  %v67 = vld [vmem:[%s0 + $0xc8] sm:$0xf]
  %v68 = vld [vmem:[%s0 + $0xcc] sm:$0xf]
  %v69 = vld [vmem:[%s0 + $0xd0] sm:$0xf]
  %v70 = vld [vmem:[%s0 + $0xd4] sm:$0xf]
  %v71 = vld [vmem:[%s0 + $0xd8] sm:$0xf]
  %v72 = vld [vmem:[%s0 + $0xdc] sm:$0xf]
  %v73 = vld [vmem:[%s0 + $0xe0] sm:$0xf]
  %v74 = vld [vmem:[%s0 + $0xe4] sm:$0xf]
  %v75 = vld [vmem:[%s0 + $0xe8] sm:$0xf]
  %v76 = vld [vmem:[%s0 + $0xec] sm:$0xf]
  %v77 = vld [vmem:[%s0 + $0xf0] sm:$0xf]
  %v78 = vld [vmem:[%s0 + $0xf4] sm:$0xf]
  %v79 = vld [vmem:[%s0 + $0xf8] sm:$0xf]
  %v80 = vld [vmem:[%s0 + $0xfc] sm:$0xf]
  %v81 = vld [vmem:[%s1] sm:$0xf]
  %v82 = vld [vmem:[%s1 + $0x4] sm:$0xf]
  %v83 = vld [vmem:[%s1 + $0x8] sm:$0xf]
  %v84 = vld [vmem:[%s1 + $0xc] sm:$0xf]
  %v85 = vld [vmem:[%s1 + $0x10] sm:$0xf]
  %v86 = vld [vmem:[%s1 + $0x14] sm:$0xf]
  %v87 = vld [vmem:[%s1 + $0x18] sm:$0x1]
  %v88 = vld [vmem:[%s2] sm:$0x1]
  %v90 = vlaneseq
  %v91 = vshrl.u32 %v90, 7
  %v92 = vsub.s32 0, %v91
  %v93 = vrot.slane %v88, %v92
  %v159 = vunpack.c.l.b16 %v17
  %v160 = vunpack.c.l.b16 %v18
  %v161 = vunpack.c.l.b16 %v19
  %v162 = vunpack.c.l.b16 %v20
  %v163 = vunpack.c.l.b16 %v21
  %v164 = vunpack.c.l.b16 %v22
  %v165 = vunpack.c.l.b16 %v23
  %v166 = vunpack.c.l.b16 %v24
  %v167 = vunpack.c.l.b16 %v25
  %v168 = vunpack.c.l.b16 %v26
  %v169 = vunpack.c.l.b16 %v27
  %v170 = vunpack.c.l.b16 %v28
  %v171 = vunpack.c.l.b16 %v29
  %v172 = vunpack.c.l.b16 %v30
  %v173 = vunpack.c.l.b16 %v31
  %v174 = vunpack.c.l.b16 %v32
  %v175 = vunpack.c.l.b16 %v33
  %v176 = vunpack.c.l.b16 %v34
  %v177 = vunpack.c.l.b16 %v35
  %v178 = vunpack.c.l.b16 %v36
  %v179 = vunpack.c.l.b16 %v37
  %v180 = vunpack.c.l.b16 %v38
  %v181 = vunpack.c.l.b16 %v39
  %v182 = vunpack.c.l.b16 %v40
  %v183 = vunpack.c.l.b16 %v41
  %v184 = vunpack.c.l.b16 %v42
  %v185 = vunpack.c.l.b16 %v43
  %v186 = vunpack.c.l.b16 %v44
  %v187 = vunpack.c.l.b16 %v45
  %v188 = vunpack.c.l.b16 %v46
  %v189 = vunpack.c.l.b16 %v47
  %v190 = vunpack.c.l.b16 %v48
  %v191 = vunpack.c.l.b16 %v49
  %v192 = vunpack.c.l.b16 %v50
  %v193 = vunpack.c.l.b16 %v51
  %v194 = vunpack.c.l.b16 %v52
  %v195 = vunpack.c.l.b16 %v53
  %v196 = vunpack.c.l.b16 %v54
  %v197 = vunpack.c.l.b16 %v55
  %v198 = vunpack.c.l.b16 %v56
  %v199 = vunpack.c.l.b16 %v57
  %v200 = vunpack.c.l.b16 %v58
  %v201 = vunpack.c.l.b16 %v59
  %v202 = vunpack.c.l.b16 %v60
  %v203 = vunpack.c.l.b16 %v61
  %v204 = vunpack.c.l.b16 %v62
  %v205 = vunpack.c.l.b16 %v63
  %v206 = vunpack.c.l.b16 %v64
  %v207 = vunpack.c.l.b16 %v65
  %v208 = vunpack.c.l.b16 %v66
  %v209 = vunpack.c.l.b16 %v67
  %v210 = vunpack.c.l.b16 %v68
  %v211 = vunpack.c.l.b16 %v69
  %v212 = vunpack.c.l.b16 %v70
  %v213 = vunpack.c.l.b16 %v71
  %v214 = vunpack.c.l.b16 %v72
  %v215 = vunpack.c.l.b16 %v73
  %v216 = vunpack.c.l.b16 %v74
  %v217 = vunpack.c.l.b16 %v75
  %v218 = vunpack.c.l.b16 %v76
  %v219 = vunpack.c.l.b16 %v77
  %v220 = vunpack.c.l.b16 %v78
  %v221 = vunpack.c.l.b16 %v79
  %v222 = vunpack.c.l.b16 %v80
  %v223 = vpack.c.b16 %v160, %v159
  %v224 = vpack.c.b16 %v162, %v161
  %v225 = vpack.c.b16 %v164, %v163
  %v226 = vpack.c.b16 %v166, %v165
  %v227 = vpack.c.b16 %v168, %v167
  %v228 = vpack.c.b16 %v170, %v169
  %v229 = vpack.c.b16 %v172, %v171
  %v230 = vpack.c.b16 %v174, %v173
  %v231 = vpack.c.b16 %v176, %v175
  %v232 = vpack.c.b16 %v178, %v177
  %v233 = vpack.c.b16 %v180, %v179
  %v234 = vpack.c.b16 %v182, %v181
  %v235 = vpack.c.b16 %v184, %v183
  %v236 = vpack.c.b16 %v186, %v185
  %v237 = vpack.c.b16 %v188, %v187
  %v238 = vpack.c.b16 %v190, %v189
  %v239 = vpack.c.b16 %v192, %v191
  %v240 = vpack.c.b16 %v194, %v193
  %v241 = vpack.c.b16 %v196, %v195
  %v242 = vpack.c.b16 %v198, %v197
  %v243 = vpack.c.b16 %v200, %v199
  %v244 = vpack.c.b16 %v202, %v201
  %v245 = vpack.c.b16 %v204, %v203
  %v246 = vpack.c.b16 %v206, %v205
  %v247 = vpack.c.b16 %v208, %v207
  %v248 = vpack.c.b16 %v210, %v209
  %v249 = vpack.c.b16 %v212, %v211
  %v250 = vpack.c.b16 %v214, %v213
  %v251 = vpack.c.b16 %v216, %v215
  %v252 = vpack.c.b16 %v218, %v217
  %v253 = vpack.c.b16 %v220, %v219
  %v254 = vpack.c.b16 %v222, %v221
  %v262 = vunpack.c.l.b16 %v81
  %v263 = vunpack.c.l.b16 %v82
  %v264 = vunpack.c.l.b16 %v83
  %v265 = vunpack.c.l.b16 %v84
  %v266 = vunpack.c.l.b16 %v85
  %v267 = vunpack.c.l.b16 %v86
  %v268 = vunpack.c.l.b16 %v87
  %v269 = vpack.c.b16 %v263, %v262
  %v270 = vpack.c.b16 %v265, %v264
  %v271 = vpack.c.b16 %v267, %v266
  %v272 = vpack.c.b16 %v268, %v268
  %vm276 = vcmask 400384
  %v278 = vsel %vm276, %v223, 0
  %v281 = vsel %vm276, %v224, 0
  %v284 = vsel %vm276, %v225, 0
  %v287 = vsel %vm276, %v226, 0
  %v290 = vsel %vm276, %v227, 0
  %v293 = vsel %vm276, %v228, 0
  %v296 = vsel %vm276, %v229, 0
  %v299 = vsel %vm276, %v230, 0
  %v302 = vsel %vm276, %v231, 0
  %v305 = vsel %vm276, %v232, 0
  %v308 = vsel %vm276, %v233, 0
  %v311 = vsel %vm276, %v234, 0
  %v314 = vsel %vm276, %v235, 0
  %v317 = vsel %vm276, %v236, 0
  %v320 = vsel %vm276, %v237, 0
  %v323 = vsel %vm276, %v238, 0
  %v326 = vsel %vm276, %v239, 0
  %v329 = vsel %vm276, %v240, 0
  %v332 = vsel %vm276, %v241, 0
  %v335 = vsel %vm276, %v242, 0
  %v338 = vsel %vm276, %v243, 0
  %v341 = vsel %vm276, %v244, 0
  %v344 = vsel %vm276, %v245, 0
  %v347 = vsel %vm276, %v246, 0
  %v350 = vsel %vm276, %v247, 0
  %v353 = vsel %vm276, %v248, 0
  %v356 = vsel %vm276, %v249, 0
  %v359 = vsel %vm276, %v250, 0
  %v362 = vsel %vm276, %v251, 0
  %v365 = vsel %vm276, %v252, 0
  %v368 = vsel %vm276, %v253, 0
  %v371 = vsel %vm276, %v254, 0
  %vm373 = vcmask 1040384
  %v374 = vsel 0, 4294967295, 65535
  %v375 = vsel %vm373, %v374, 0
  %v377 = vand.u32 %v272, %v375
  %379 = vmatprep.subr.bf16.mxu0 0
  %380 = vmatpush1.bf16.msra.mxu0 %v269
  %381 = vmatprep.subr.bf16.mxu0 0
  %382 = vmatpush1.bf16.msra.mxu0 %v270
  %383 = vmatprep.subr.bf16.mxu0 0
  %384 = vmatpush1.bf16.msra.mxu0 %v271
  %385 = vmatprep.subr.bf16.mxu0 0
  %386 = vmatpush1.bf16.msra.mxu0 %v377
  %387 = vmatprep.subr.bf16.mxu0 0
  %388 = vmatpush1.bf16.msra.mxu0 0
  %389 = vmatprep.subr.bf16.mxu0 0
  %390 = vmatpush1.bf16.msra.mxu0 0
  %391 = vmatprep.subr.bf16.mxu0 0
  %392 = vmatpush1.bf16.msra.mxu0 0
  %393 = vmatprep.subr.bf16.mxu0 0
  %394 = vmatpush1.bf16.msra.mxu0 0
  %395 = vmatprep.subr.bf16.mxu0 0
  %396 = vmatpush1.bf16.msra.mxu0 0
  %397 = vmatprep.subr.bf16.mxu0 0
  %398 = vmatpush1.bf16.msra.mxu0 0
  %399 = vmatprep.subr.bf16.mxu0 0
  %400 = vmatpush1.bf16.msra.mxu0 0
  %401 = vmatprep.subr.bf16.mxu0 0
  %402 = vmatpush1.bf16.msra.mxu0 0
  %403 = vmatprep.subr.bf16.mxu0 0
  %404 = vmatpush1.bf16.msra.mxu0 0
  %405 = vmatprep.subr.bf16.mxu0 0
  %406 = vmatpush1.bf16.msra.mxu0 0
  %407 = vmatprep.subr.bf16.mxu0 0
  %408 = vmatpush1.bf16.msra.mxu0 0
  %409 = vmatprep.subr.bf16.mxu0 0
  %410 = vmatpush1.bf16.msra.mxu0 0
  %411 = vmatprep.mubr.bf16.mxu0 0
  %412 = vmatmul.mubr.bf16.gmra.mrb[0].mxu0 %v278
  %v413 = vpop.f32.mrb[0].mxu0
  %v414 = vadd.f32 %v93, %v413
  %v415 = vpop.f32.mrb[0].mxu0
  %v416 = vpop.f32.mrb[0].mxu0
  %v417 = vadd.f32 %v93, %v416
  %v418 = vpop.f32.mrb[0].mxu0
  %419 = vmatprep.mubr.bf16.mxu0 0
  %420 = vmatmul.mubr.bf16.gmra.mrb[0].mxu0 %v281
  %v421 = vpop.f32.mrb[0].mxu0
  %v422 = vadd.f32 %v93, %v421
  %v423 = vpop.f32.mrb[0].mxu0
  %v424 = vpop.f32.mrb[0].mxu0
  %v425 = vadd.f32 %v93, %v424
  %v426 = vpop.f32.mrb[0].mxu0
  %427 = vmatprep.mubr.bf16.mxu0 0
  %428 = vmatmul.mubr.bf16.gmra.mrb[0].mxu0 %v284
  %v429 = vpop.f32.mrb[0].mxu0
  %v430 = vadd.f32 %v93, %v429
  %v431 = vpop.f32.mrb[0].mxu0
  %v432 = vpop.f32.mrb[0].mxu0
  %v433 = vadd.f32 %v93, %v432
  %v434 = vpop.f32.mrb[0].mxu0
  %435 = vmatprep.mubr.bf16.mxu0 0
  %436 = vmatmul.mubr.bf16.gmra.mrb[0].mxu0 %v287
  %v437 = vpop.f32.mrb[0].mxu0
  %v438 = vadd.f32 %v93, %v437
  %v439 = vpop.f32.mrb[0].mxu0
  %v440 = vpop.f32.mrb[0].mxu0
  %v441 = vadd.f32 %v93, %v440
  %v442 = vpop.f32.mrb[0].mxu0
  %443 = vmatprep.mubr.bf16.mxu0 0
  %444 = vmatmul.mubr.bf16.gmra.mrb[0].mxu0 %v290
  %v445 = vpop.f32.mrb[0].mxu0
  %v446 = vadd.f32 %v93, %v445
  %v447 = vpop.f32.mrb[0].mxu0
  %v448 = vpop.f32.mrb[0].mxu0
  %v449 = vadd.f32 %v93, %v448
  %v450 = vpop.f32.mrb[0].mxu0
  %451 = vmatprep.mubr.bf16.mxu0 0
  %452 = vmatmul.mubr.bf16.gmra.mrb[0].mxu0 %v293
  %v453 = vpop.f32.mrb[0].mxu0
  %v454 = vadd.f32 %v93, %v453
  %v455 = vpop.f32.mrb[0].mxu0
  %v456 = vpop.f32.mrb[0].mxu0
  %v457 = vadd.f32 %v93, %v456
  %v458 = vpop.f32.mrb[0].mxu0
  %459 = vmatprep.mubr.bf16.mxu0 0
  %460 = vmatmul.mubr.bf16.gmra.mrb[0].mxu0 %v296
  %v461 = vpop.f32.mrb[0].mxu0
  %v462 = vadd.f32 %v93, %v461
  %v463 = vpop.f32.mrb[0].mxu0
  %v464 = vpop.f32.mrb[0].mxu0
  %v465 = vadd.f32 %v93, %v464
  %v466 = vpop.f32.mrb[0].mxu0
  %467 = vmatprep.mubr.bf16.mxu0 0
  %468 = vmatmul.mubr.bf16.gmra.mrb[0].mxu0 %v299
  %v469 = vpop.f32.mrb[0].mxu0
  %v470 = vadd.f32 %v93, %v469
  %v471 = vpop.f32.mrb[0].mxu0
  %v472 = vpop.f32.mrb[0].mxu0
  %v473 = vadd.f32 %v93, %v472
  %v474 = vpop.f32.mrb[0].mxu0
  %475 = vmatprep.mubr.bf16.mxu0 0
  %476 = vmatmul.mubr.bf16.gmra.mrb[0].mxu0 %v302
  %v477 = vpop.f32.mrb[0].mxu0
  %v478 = vadd.f32 %v93, %v477
  %v479 = vpop.f32.mrb[0].mxu0
  %v480 = vpop.f32.mrb[0].mxu0
  %v481 = vadd.f32 %v93, %v480
  %v482 = vpop.f32.mrb[0].mxu0
  %483 = vmatprep.mubr.bf16.mxu0 0
  %484 = vmatmul.mubr.bf16.gmra.mrb[0].mxu0 %v305
  %v485 = vpop.f32.mrb[0].mxu0
  %v486 = vadd.f32 %v93, %v485
  %v487 = vpop.f32.mrb[0].mxu0
  %v488 = vpop.f32.mrb[0].mxu0
  %v489 = vadd.f32 %v93, %v488
  %v490 = vpop.f32.mrb[0].mxu0
  %491 = vmatprep.mubr.bf16.mxu0 0
  %492 = vmatmul.mubr.bf16.gmra.mrb[0].mxu0 %v308
  %v493 = vpop.f32.mrb[0].mxu0
  %v494 = vadd.f32 %v93, %v493
  %v495 = vpop.f32.mrb[0].mxu0
  %v496 = vpop.f32.mrb[0].mxu0
  %v497 = vadd.f32 %v93, %v496
  %v498 = vpop.f32.mrb[0].mxu0
  %499 = vmatprep.mubr.bf16.mxu0 0
  %500 = vmatmul.mubr.bf16.gmra.mrb[0].mxu0 %v311
  %v501 = vpop.f32.mrb[0].mxu0
  %v502 = vadd.f32 %v93, %v501
  %v503 = vpop.f32.mrb[0].mxu0
  %v504 = vpop.f32.mrb[0].mxu0
  %v505 = vadd.f32 %v93, %v504
  %v506 = vpop.f32.mrb[0].mxu0
  %507 = vmatprep.mubr.bf16.mxu0 0
  %508 = vmatmul.mubr.bf16.gmra.mrb[0].mxu0 %v314
  %v509 = vpop.f32.mrb[0].mxu0
  %v510 = vadd.f32 %v93, %v509
  %v511 = vpop.f32.mrb[0].mxu0
  %v512 = vpop.f32.mrb[0].mxu0
  %v513 = vadd.f32 %v93, %v512
  %v514 = vpop.f32.mrb[0].mxu0
  %515 = vmatprep.mubr.bf16.mxu0 0
  %516 = vmatmul.mubr.bf16.gmra.mrb[0].mxu0 %v317
  %v517 = vpop.f32.mrb[0].mxu0
  %v518 = vadd.f32 %v93, %v517
  %v519 = vpop.f32.mrb[0].mxu0
  %v520 = vpop.f32.mrb[0].mxu0
  %v521 = vadd.f32 %v93, %v520
  %v522 = vpop.f32.mrb[0].mxu0
  %523 = vmatprep.mubr.bf16.mxu0 0
  %524 = vmatmul.mubr.bf16.gmra.mrb[0].mxu0 %v320
  %v525 = vpop.f32.mrb[0].mxu0
  %v526 = vadd.f32 %v93, %v525
  %v527 = vpop.f32.mrb[0].mxu0
  %v528 = vpop.f32.mrb[0].mxu0
  %v529 = vadd.f32 %v93, %v528
  %v530 = vpop.f32.mrb[0].mxu0
  %531 = vmatprep.mubr.bf16.mxu0 0
  %532 = vmatmul.mubr.bf16.gmra.mrb[0].mxu0 %v323
  %v533 = vpop.f32.mrb[0].mxu0
  %v534 = vadd.f32 %v93, %v533
  %v535 = vpop.f32.mrb[0].mxu0
  %v536 = vpop.f32.mrb[0].mxu0
  %v537 = vadd.f32 %v93, %v536
  %v538 = vpop.f32.mrb[0].mxu0
  %539 = vmatprep.mubr.bf16.mxu0 0
  %540 = vmatmul.mubr.bf16.gmra.mrb[0].mxu0 %v326
  %v541 = vpop.f32.mrb[0].mxu0
  %v542 = vadd.f32 %v93, %v541
  %v543 = vpop.f32.mrb[0].mxu0
  %v544 = vpop.f32.mrb[0].mxu0
  %v545 = vadd.f32 %v93, %v544
  %v546 = vpop.f32.mrb[0].mxu0
  %547 = vmatprep.mubr.bf16.mxu0 0
  %548 = vmatmul.mubr.bf16.gmra.mrb[0].mxu0 %v329
  %v549 = vpop.f32.mrb[0].mxu0
  %v550 = vadd.f32 %v93, %v549
  %v551 = vpop.f32.mrb[0].mxu0
  %v552 = vpop.f32.mrb[0].mxu0
  %v553 = vadd.f32 %v93, %v552
  %v554 = vpop.f32.mrb[0].mxu0
  %555 = vmatprep.mubr.bf16.mxu0 0
  %556 = vmatmul.mubr.bf16.gmra.mrb[0].mxu0 %v332
  %v557 = vpop.f32.mrb[0].mxu0
  %v558 = vadd.f32 %v93, %v557
  %v559 = vpop.f32.mrb[0].mxu0
  %v560 = vpop.f32.mrb[0].mxu0
  %v561 = vadd.f32 %v93, %v560
  %v562 = vpop.f32.mrb[0].mxu0
  %563 = vmatprep.mubr.bf16.mxu0 0
  %564 = vmatmul.mubr.bf16.gmra.mrb[0].mxu0 %v335
  %v565 = vpop.f32.mrb[0].mxu0
  %v566 = vadd.f32 %v93, %v565
  %v567 = vpop.f32.mrb[0].mxu0
  %v568 = vpop.f32.mrb[0].mxu0
  %v569 = vadd.f32 %v93, %v568
  %v570 = vpop.f32.mrb[0].mxu0
  %571 = vmatprep.mubr.bf16.mxu0 0
  %572 = vmatmul.mubr.bf16.gmra.mrb[0].mxu0 %v338
  %v573 = vpop.f32.mrb[0].mxu0
  %v574 = vadd.f32 %v93, %v573
  %v575 = vpop.f32.mrb[0].mxu0
  %v576 = vpop.f32.mrb[0].mxu0
  %v577 = vadd.f32 %v93, %v576
  %v578 = vpop.f32.mrb[0].mxu0
  %579 = vmatprep.mubr.bf16.mxu0 0
  %580 = vmatmul.mubr.bf16.gmra.mrb[0].mxu0 %v341
  %v581 = vpop.f32.mrb[0].mxu0
  %v582 = vadd.f32 %v93, %v581
  %v583 = vpop.f32.mrb[0].mxu0
  %v584 = vpop.f32.mrb[0].mxu0
  %v585 = vadd.f32 %v93, %v584
  %v586 = vpop.f32.mrb[0].mxu0
  %587 = vmatprep.mubr.bf16.mxu0 0
  %588 = vmatmul.mubr.bf16.gmra.mrb[0].mxu0 %v344
  %v589 = vpop.f32.mrb[0].mxu0
  %v590 = vadd.f32 %v93, %v589
  %v591 = vpop.f32.mrb[0].mxu0
  %v592 = vpop.f32.mrb[0].mxu0
  %v593 = vadd.f32 %v93, %v592
  %v594 = vpop.f32.mrb[0].mxu0
  %595 = vmatprep.mubr.bf16.mxu0 0
  %596 = vmatmul.mubr.bf16.gmra.mrb[0].mxu0 %v347
  %v597 = vpop.f32.mrb[0].mxu0
  %v598 = vadd.f32 %v93, %v597
  %v599 = vpop.f32.mrb[0].mxu0
  %v600 = vpop.f32.mrb[0].mxu0
  %v601 = vadd.f32 %v93, %v600
  %v602 = vpop.f32.mrb[0].mxu0
  %603 = vmatprep.mubr.bf16.mxu0 0
  %604 = vmatmul.mubr.bf16.gmra.mrb[0].mxu0 %v350
  %v605 = vpop.f32.mrb[0].mxu0
  %v606 = vadd.f32 %v93, %v605
  %v607 = vpop.f32.mrb[0].mxu0
  %v608 = vpop.f32.mrb[0].mxu0
  %v609 = vadd.f32 %v93, %v608
  %v610 = vpop.f32.mrb[0].mxu0
  %611 = vmatprep.mubr.bf16.mxu0 0
  %612 = vmatmul.mubr.bf16.gmra.mrb[0].mxu0 %v353
  %v613 = vpop.f32.mrb[0].mxu0
  %v614 = vadd.f32 %v93, %v613
  %v615 = vpop.f32.mrb[0].mxu0
  %v616 = vpop.f32.mrb[0].mxu0
  %v617 = vadd.f32 %v93, %v616
  %v618 = vpop.f32.mrb[0].mxu0
  %619 = vmatprep.mubr.bf16.mxu0 0
  %620 = vmatmul.mubr.bf16.gmra.mrb[0].mxu0 %v356
  %v621 = vpop.f32.mrb[0].mxu0
  %v622 = vadd.f32 %v93, %v621
  %v623 = vpop.f32.mrb[0].mxu0
  %v624 = vpop.f32.mrb[0].mxu0
  %v625 = vadd.f32 %v93, %v624
  %v626 = vpop.f32.mrb[0].mxu0
  %627 = vmatprep.mubr.bf16.mxu0 0
  %628 = vmatmul.mubr.bf16.gmra.mrb[0].mxu0 %v359
  %v629 = vpop.f32.mrb[0].mxu0
  %v630 = vadd.f32 %v93, %v629
  %v631 = vpop.f32.mrb[0].mxu0
  %v632 = vpop.f32.mrb[0].mxu0
  %v633 = vadd.f32 %v93, %v632
  %v634 = vpop.f32.mrb[0].mxu0
  %635 = vmatprep.mubr.bf16.mxu0 0
  %636 = vmatmul.mubr.bf16.gmra.mrb[0].mxu0 %v362
  %v637 = vpop.f32.mrb[0].mxu0
  %v638 = vadd.f32 %v93, %v637
  %v639 = vpop.f32.mrb[0].mxu0
  %v640 = vpop.f32.mrb[0].mxu0
  %v641 = vadd.f32 %v93, %v640
  %v642 = vpop.f32.mrb[0].mxu0
  %643 = vmatprep.mubr.bf16.mxu0 0
  %644 = vmatmul.mubr.bf16.gmra.mrb[0].mxu0 %v365
  %v645 = vpop.f32.mrb[0].mxu0
  %v646 = vadd.f32 %v93, %v645
  %v647 = vpop.f32.mrb[0].mxu0
  %v648 = vpop.f32.mrb[0].mxu0
  %v649 = vadd.f32 %v93, %v648
  %v650 = vpop.f32.mrb[0].mxu0
  %651 = vmatprep.mubr.bf16.mxu0 0
  %652 = vmatmul.mubr.bf16.gmra.mrb[0].mxu0 %v368
  %v653 = vpop.f32.mrb[0].mxu0
  %v654 = vadd.f32 %v93, %v653
  %v655 = vpop.f32.mrb[0].mxu0
  %v656 = vpop.f32.mrb[0].mxu0
  %v657 = vadd.f32 %v93, %v656
  %v658 = vpop.f32.mrb[0].mxu0
  %659 = vmatprep.mubr.bf16.mxu0 0
  %660 = vmatmul.mubr.bf16.gmra.mrb[0].mxu0 %v371
  %v661 = vpop.f32.mrb[0].mxu0
  %v662 = vadd.f32 %v93, %v661
  %v663 = vpop.f32.mrb[0].mxu0
  %v664 = vpop.f32.mrb[0].mxu0
  %v665 = vadd.f32 %v93, %v664
  %v666 = vpop.f32.mrb[0].mxu0
  %667 = vdwg.mxu0
  %v668 = vmax.f32 %v414, 0.0
  %v669 = vmax.f32 %v417, 0.0
  %v670 = vmax.f32 %v422, 0.0
  %v671 = vmax.f32 %v425, 0.0
  %v672 = vmax.f32 %v430, 0.0
  %v673 = vmax.f32 %v433, 0.0
  %v674 = vmax.f32 %v438, 0.0
  %v675 = vmax.f32 %v441, 0.0
  %v676 = vmax.f32 %v446, 0.0
  %v677 = vmax.f32 %v449, 0.0
  %v678 = vmax.f32 %v454, 0.0
  %v679 = vmax.f32 %v457, 0.0
  %v680 = vmax.f32 %v462, 0.0
  %v681 = vmax.f32 %v465, 0.0
  %v682 = vmax.f32 %v470, 0.0
  %v683 = vmax.f32 %v473, 0.0
  %v684 = vmax.f32 %v478, 0.0
  %v685 = vmax.f32 %v481, 0.0
  %v686 = vmax.f32 %v486, 0.0
  %v687 = vmax.f32 %v489, 0.0
  %v688 = vmax.f32 %v494, 0.0
  %v689 = vmax.f32 %v497, 0.0
  %v690 = vmax.f32 %v502, 0.0
  %v691 = vmax.f32 %v505, 0.0
  %v692 = vmax.f32 %v510, 0.0
  %v693 = vmax.f32 %v513, 0.0
  %v694 = vmax.f32 %v518, 0.0
  %v695 = vmax.f32 %v521, 0.0
  %v696 = vmax.f32 %v526, 0.0
  %v697 = vmax.f32 %v529, 0.0
  %v698 = vmax.f32 %v534, 0.0
  %v699 = vmax.f32 %v537, 0.0
  %v700 = vmax.f32 %v542, 0.0
  %v701 = vmax.f32 %v545, 0.0
  %v702 = vmax.f32 %v550, 0.0
  %v703 = vmax.f32 %v553, 0.0
  %v704 = vmax.f32 %v558, 0.0
  %v705 = vmax.f32 %v561, 0.0
  %v706 = vmax.f32 %v566, 0.0
  %v707 = vmax.f32 %v569, 0.0
  %v708 = vmax.f32 %v574, 0.0
  %v709 = vmax.f32 %v577, 0.0
  %v710 = vmax.f32 %v582, 0.0
  %v711 = vmax.f32 %v585, 0.0
  %v712 = vmax.f32 %v590, 0.0
  %v713 = vmax.f32 %v593, 0.0
  %v714 = vmax.f32 %v598, 0.0
  %v715 = vmax.f32 %v601, 0.0
  %v716 = vmax.f32 %v606, 0.0
  %v717 = vmax.f32 %v609, 0.0
  %v718 = vmax.f32 %v614, 0.0
  %v719 = vmax.f32 %v617, 0.0
  %v720 = vmax.f32 %v622, 0.0
  %v721 = vmax.f32 %v625, 0.0
  %v722 = vmax.f32 %v630, 0.0
  %v723 = vmax.f32 %v633, 0.0
  %v724 = vmax.f32 %v638, 0.0
  %v725 = vmax.f32 %v641, 0.0
  %v726 = vmax.f32 %v646, 0.0
  %v727 = vmax.f32 %v649, 0.0
  %v728 = vmax.f32 %v654, 0.0
  %v729 = vmax.f32 %v657, 0.0
  %v730 = vmax.f32 %v662, 0.0
  %v731 = vmax.f32 %v665, 0.0
  %v732 = vpack.c.bf16 %v669, %v668
  %v733 = vpack.c.bf16 %v671, %v670
  %v734 = vpack.c.bf16 %v673, %v672
  %v735 = vpack.c.bf16 %v675, %v674
  %v736 = vpack.c.bf16 %v677, %v676
  %v737 = vpack.c.bf16 %v679, %v678
  %v738 = vpack.c.bf16 %v681, %v680
  %v739 = vpack.c.bf16 %v683, %v682
  %v740 = vpack.c.bf16 %v685, %v684
  %v741 = vpack.c.bf16 %v687, %v686
  %v742 = vpack.c.bf16 %v689, %v688
  %v743 = vpack.c.bf16 %v691, %v690
  %v744 = vpack.c.bf16 %v693, %v692
  %v745 = vpack.c.bf16 %v695, %v694
  %v746 = vpack.c.bf16 %v697, %v696
  %v747 = vpack.c.bf16 %v699, %v698
  %v748 = vpack.c.bf16 %v701, %v700
  %v749 = vpack.c.bf16 %v703, %v702
  %v750 = vpack.c.bf16 %v705, %v704
  %v751 = vpack.c.bf16 %v707, %v706
  %v752 = vpack.c.bf16 %v709, %v708
  %v753 = vpack.c.bf16 %v711, %v710
  %v754 = vpack.c.bf16 %v713, %v712
  %v755 = vpack.c.bf16 %v715, %v714
  %v756 = vpack.c.bf16 %v717, %v716
  %v757 = vpack.c.bf16 %v719, %v718
  %v758 = vpack.c.bf16 %v721, %v720
  %v759 = vpack.c.bf16 %v723, %v722
  %v760 = vpack.c.bf16 %v725, %v724
  %v761 = vpack.c.bf16 %v727, %v726
  %v762 = vpack.c.bf16 %v729, %v728
  %v763 = vpack.c.bf16 %v731, %v730
  %v796 = vunpack.c.l.b16 %v732
  %v797 = vunpack.c.h.b16 %v732
  %v798 = vunpack.c.l.b16 %v733
  %v799 = vunpack.c.h.b16 %v733
  %v800 = vunpack.c.l.b16 %v734
  %v801 = vunpack.c.h.b16 %v734
  %v802 = vunpack.c.l.b16 %v735
  %v803 = vunpack.c.h.b16 %v735
  %v804 = vunpack.c.l.b16 %v736
  %v805 = vunpack.c.h.b16 %v736
  %v806 = vunpack.c.l.b16 %v737
  %v807 = vunpack.c.h.b16 %v737
  %v808 = vunpack.c.l.b16 %v738
  %v809 = vunpack.c.h.b16 %v738
  %v810 = vunpack.c.l.b16 %v739
  %v811 = vunpack.c.h.b16 %v739
  %v812 = vunpack.c.l.b16 %v740
  %v813 = vunpack.c.h.b16 %v740
  %v814 = vunpack.c.l.b16 %v741
  %v815 = vunpack.c.h.b16 %v741
  %v816 = vunpack.c.l.b16 %v742
  %v817 = vunpack.c.h.b16 %v742
  %v818 = vunpack.c.l.b16 %v743
  %v819 = vunpack.c.h.b16 %v743
  %v820 = vunpack.c.l.b16 %v744
  %v821 = vunpack.c.h.b16 %v744
  %v822 = vunpack.c.l.b16 %v745
  %v823 = vunpack.c.h.b16 %v745
  %v824 = vunpack.c.l.b16 %v746
  %v825 = vunpack.c.h.b16 %v746
  %v826 = vunpack.c.l.b16 %v747
  %v827 = vunpack.c.h.b16 %v747
  %v828 = vunpack.c.l.b16 %v748
  %v829 = vunpack.c.h.b16 %v748
  %v830 = vunpack.c.l.b16 %v749
  %v831 = vunpack.c.h.b16 %v749
  %v832 = vunpack.c.l.b16 %v750
  %v833 = vunpack.c.h.b16 %v750
  %v834 = vunpack.c.l.b16 %v751
  %v835 = vunpack.c.h.b16 %v751
  %v836 = vunpack.c.l.b16 %v752
  %v837 = vunpack.c.h.b16 %v752
  %v838 = vunpack.c.l.b16 %v753
  %v839 = vunpack.c.h.b16 %v753
  %v840 = vunpack.c.l.b16 %v754
  %v841 = vunpack.c.h.b16 %v754
  %v842 = vunpack.c.l.b16 %v755
  %v843 = vunpack.c.h.b16 %v755
  %v844 = vunpack.c.l.b16 %v756
  %v845 = vunpack.c.h.b16 %v756
  %v846 = vunpack.c.l.b16 %v757
  %v847 = vunpack.c.h.b16 %v757
  %v848 = vunpack.c.l.b16 %v758
  %v849 = vunpack.c.h.b16 %v758
  %v850 = vunpack.c.l.b16 %v759
  %v851 = vunpack.c.h.b16 %v759
  %v852 = vunpack.c.l.b16 %v760
  %v853 = vunpack.c.h.b16 %v760
  %v854 = vunpack.c.l.b16 %v761
  %v855 = vunpack.c.h.b16 %v761
  %v856 = vunpack.c.l.b16 %v762
  %v857 = vunpack.c.h.b16 %v762
  %v858 = vunpack.c.l.b16 %v763
  %v859 = vunpack.c.h.b16 %v763
  %v860 = vpack.c.b16 %v796, %v796
  %v861 = vpack.c.b16 %v797, %v797
  %v862 = vpack.c.b16 %v798, %v798
  %v863 = vpack.c.b16 %v799, %v799
  %v864 = vpack.c.b16 %v800, %v800
  %v865 = vpack.c.b16 %v801, %v801
  %v866 = vpack.c.b16 %v802, %v802
  %v867 = vpack.c.b16 %v803, %v803
  %v868 = vpack.c.b16 %v804, %v804
  %v869 = vpack.c.b16 %v805, %v805
  %v870 = vpack.c.b16 %v806, %v806
  %v871 = vpack.c.b16 %v807, %v807
  %v872 = vpack.c.b16 %v808, %v808
  %v873 = vpack.c.b16 %v809, %v809
  %v874 = vpack.c.b16 %v810, %v810
  %v875 = vpack.c.b16 %v811, %v811
  %v876 = vpack.c.b16 %v812, %v812
  %v877 = vpack.c.b16 %v813, %v813
  %v878 = vpack.c.b16 %v814, %v814
  %v879 = vpack.c.b16 %v815, %v815
  %v880 = vpack.c.b16 %v816, %v816
  %v881 = vpack.c.b16 %v817, %v817
  %v882 = vpack.c.b16 %v818, %v818
  %v883 = vpack.c.b16 %v819, %v819
  %v884 = vpack.c.b16 %v820, %v820
  %v885 = vpack.c.b16 %v821, %v821
  %v886 = vpack.c.b16 %v822, %v822
  %v887 = vpack.c.b16 %v823, %v823
  %v888 = vpack.c.b16 %v824, %v824
  %v889 = vpack.c.b16 %v825, %v825
  %v890 = vpack.c.b16 %v826, %v826
  %v891 = vpack.c.b16 %v827, %v827
  %v892 = vpack.c.b16 %v828, %v828
  %v893 = vpack.c.b16 %v829, %v829
  %v894 = vpack.c.b16 %v830, %v830
  %v895 = vpack.c.b16 %v831, %v831
  %v896 = vpack.c.b16 %v832, %v832
  %v897 = vpack.c.b16 %v833, %v833
  %v898 = vpack.c.b16 %v834, %v834
  %v899 = vpack.c.b16 %v835, %v835
  %v900 = vpack.c.b16 %v836, %v836
  %v901 = vpack.c.b16 %v837, %v837
  %v902 = vpack.c.b16 %v838, %v838
  %v903 = vpack.c.b16 %v839, %v839
  %v904 = vpack.c.b16 %v840, %v840
  %v905 = vpack.c.b16 %v841, %v841
  %v906 = vpack.c.b16 %v842, %v842
  %v907 = vpack.c.b16 %v843, %v843
  %v908 = vpack.c.b16 %v844, %v844
  %v909 = vpack.c.b16 %v845, %v845
  %v910 = vpack.c.b16 %v846, %v846
  %v911 = vpack.c.b16 %v847, %v847
  %v912 = vpack.c.b16 %v848, %v848
  %v913 = vpack.c.b16 %v849, %v849
  %v914 = vpack.c.b16 %v850, %v850
  %v915 = vpack.c.b16 %v851, %v851
  %v916 = vpack.c.b16 %v852, %v852
  %v917 = vpack.c.b16 %v853, %v853
  %v918 = vpack.c.b16 %v854, %v854
  %v919 = vpack.c.b16 %v855, %v855
  %v920 = vpack.c.b16 %v856, %v856
  %v921 = vpack.c.b16 %v857, %v857
  %v922 = vpack.c.b16 %v858, %v858
  %v923 = vpack.c.b16 %v859, %v859
  %vm988 = vcmask 519168
  %989 = vst.msk [vmem:[%s3] sm:$0xf] %vm988, %v860
  %990 = vst.msk [vmem:[%s3 + $0x4] sm:$0xf] %vm988, %v861
  %991 = vst.msk [vmem:[%s3 + $0x8] sm:$0xf] %vm988, %v862
  %992 = vst.msk [vmem:[%s3 + $0xc] sm:$0xf] %vm988, %v863
  %993 = vst.msk [vmem:[%s3 + $0x10] sm:$0xf] %vm988, %v864
  %994 = vst.msk [vmem:[%s3 + $0x14] sm:$0xf] %vm988, %v865
  %995 = vst.msk [vmem:[%s3 + $0x18] sm:$0xf] %vm988, %v866
  %996 = vst.msk [vmem:[%s3 + $0x1c] sm:$0xf] %vm988, %v867
  %997 = vst.msk [vmem:[%s3 + $0x20] sm:$0xf] %vm988, %v868
  %998 = vst.msk [vmem:[%s3 + $0x24] sm:$0xf] %vm988, %v869
  %999 = vst.msk [vmem:[%s3 + $0x28] sm:$0xf] %vm988, %v870
  %1000 = vst.msk [vmem:[%s3 + $0x2c] sm:$0xf] %vm988, %v871
  %1001 = vst.msk [vmem:[%s3 + $0x30] sm:$0xf] %vm988, %v872
  %1002 = vst.msk [vmem:[%s3 + $0x34] sm:$0xf] %vm988, %v873
  %1003 = vst.msk [vmem:[%s3 + $0x38] sm:$0xf] %vm988, %v874
  %1004 = vst.msk [vmem:[%s3 + $0x3c] sm:$0xf] %vm988, %v875
  %1005 = vst.msk [vmem:[%s3 + $0x40] sm:$0xf] %vm988, %v876
  %1006 = vst.msk [vmem:[%s3 + $0x44] sm:$0xf] %vm988, %v877
  %1007 = vst.msk [vmem:[%s3 + $0x48] sm:$0xf] %vm988, %v878
  %1008 = vst.msk [vmem:[%s3 + $0x4c] sm:$0xf] %vm988, %v879
  %1009 = vst.msk [vmem:[%s3 + $0x50] sm:$0xf] %vm988, %v880
  %1010 = vst.msk [vmem:[%s3 + $0x54] sm:$0xf] %vm988, %v881
  %1011 = vst.msk [vmem:[%s3 + $0x58] sm:$0xf] %vm988, %v882
  %1012 = vst.msk [vmem:[%s3 + $0x5c] sm:$0xf] %vm988, %v883
  %1013 = vst.msk [vmem:[%s3 + $0x60] sm:$0xf] %vm988, %v884
  %1014 = vst.msk [vmem:[%s3 + $0x64] sm:$0xf] %vm988, %v885
  %1015 = vst.msk [vmem:[%s3 + $0x68] sm:$0xf] %vm988, %v886
  %1016 = vst.msk [vmem:[%s3 + $0x6c] sm:$0xf] %vm988, %v887
  %1017 = vst.msk [vmem:[%s3 + $0x70] sm:$0xf] %vm988, %v888
  %1018 = vst.msk [vmem:[%s3 + $0x74] sm:$0xf] %vm988, %v889
  %1019 = vst.msk [vmem:[%s3 + $0x78] sm:$0xf] %vm988, %v890
  %1020 = vst.msk [vmem:[%s3 + $0x7c] sm:$0xf] %vm988, %v891
  %1021 = vst.msk [vmem:[%s3 + $0x80] sm:$0xf] %vm988, %v892
  %1022 = vst.msk [vmem:[%s3 + $0x84] sm:$0xf] %vm988, %v893
  %1023 = vst.msk [vmem:[%s3 + $0x88] sm:$0xf] %vm988, %v894
  %1024 = vst.msk [vmem:[%s3 + $0x8c] sm:$0xf] %vm988, %v895
  %1025 = vst.msk [vmem:[%s3 + $0x90] sm:$0xf] %vm988, %v896
  %1026 = vst.msk [vmem:[%s3 + $0x94] sm:$0xf] %vm988, %v897
  %1027 = vst.msk [vmem:[%s3 + $0x98] sm:$0xf] %vm988, %v898
  %1028 = vst.msk [vmem:[%s3 + $0x9c] sm:$0xf] %vm988, %v899
  %1029 = vst.msk [vmem:[%s3 + $0xa0] sm:$0xf] %vm988, %v900
  %1030 = vst.msk [vmem:[%s3 + $0xa4] sm:$0xf] %vm988, %v901
  %1031 = vst.msk [vmem:[%s3 + $0xa8] sm:$0xf] %vm988, %v902
  %1032 = vst.msk [vmem:[%s3 + $0xac] sm:$0xf] %vm988, %v903
  %1033 = vst.msk [vmem:[%s3 + $0xb0] sm:$0xf] %vm988, %v904
  %1034 = vst.msk [vmem:[%s3 + $0xb4] sm:$0xf] %vm988, %v905
  %1035 = vst.msk [vmem:[%s3 + $0xb8] sm:$0xf] %vm988, %v906
  %1036 = vst.msk [vmem:[%s3 + $0xbc] sm:$0xf] %vm988, %v907
  %1037 = vst.msk [vmem:[%s3 + $0xc0] sm:$0xf] %vm988, %v908
  %1038 = vst.msk [vmem:[%s3 + $0xc4] sm:$0xf] %vm988, %v909
  %1039 = vst.msk [vmem:[%s3 + $0xc8] sm:$0xf] %vm988, %v910
  %1040 = vst.msk [vmem:[%s3 + $0xcc] sm:$0xf] %vm988, %v911
  %1041 = vst.msk [vmem:[%s3 + $0xd0] sm:$0xf] %vm988, %v912
  %1042 = vst.msk [vmem:[%s3 + $0xd4] sm:$0xf] %vm988, %v913
  %1043 = vst.msk [vmem:[%s3 + $0xd8] sm:$0xf] %vm988, %v914
  %1044 = vst.msk [vmem:[%s3 + $0xdc] sm:$0xf] %vm988, %v915
  %1045 = vst.msk [vmem:[%s3 + $0xe0] sm:$0xf] %vm988, %v916
  %1046 = vst.msk [vmem:[%s3 + $0xe4] sm:$0xf] %vm988, %v917
  %1047 = vst.msk [vmem:[%s3 + $0xe8] sm:$0xf] %vm988, %v918
  %1048 = vst.msk [vmem:[%s3 + $0xec] sm:$0xf] %vm988, %v919
  %1049 = vst.msk [vmem:[%s3 + $0xf0] sm:$0xf] %vm988, %v920
  %1050 = vst.msk [vmem:[%s3 + $0xf4] sm:$0xf] %vm988, %v921
  %1051 = vst.msk [vmem:[%s3 + $0xf8] sm:$0xf] %vm988, %v922
  %1052 = vst.msk [vmem:[%s3 + $0xfc] sm:$0xf] %vm988, %v923
  %vm1053 = vcmask 523264
  %v1054 = vsel %vm1053, %v668, 0.0
  %1055 = vadd.xlane.f32.xlu0 %v1054
  %v1056 = vpop.xlane.xlu0 %1055
  %v1057 = vsel %vm1053, %v669, 0.0
  %1058 = vadd.xlane.f32.xlu0 %v1057
  %v1059 = vpop.xlane.xlu0 %1058
  %v1060 = vsel %vm1053, %v670, 0.0
  %1061 = vadd.xlane.f32.xlu0 %v1060
  %v1062 = vpop.xlane.xlu0 %1061
  %v1063 = vsel %vm1053, %v671, 0.0
  %1064 = vadd.xlane.f32.xlu0 %v1063
  %v1065 = vpop.xlane.xlu0 %1064
  %v1066 = vsel %vm1053, %v672, 0.0
  %1067 = vadd.xlane.f32.xlu0 %v1066
  %v1068 = vpop.xlane.xlu0 %1067
  %v1069 = vsel %vm1053, %v673, 0.0
  %1070 = vadd.xlane.f32.xlu0 %v1069
  %v1071 = vpop.xlane.xlu0 %1070
  %v1072 = vsel %vm1053, %v674, 0.0
  %1073 = vadd.xlane.f32.xlu0 %v1072
  %v1074 = vpop.xlane.xlu0 %1073
  %v1075 = vsel %vm1053, %v675, 0.0
  %1076 = vadd.xlane.f32.xlu0 %v1075
  %v1077 = vpop.xlane.xlu0 %1076
  %v1078 = vsel %vm1053, %v676, 0.0
  %1079 = vadd.xlane.f32.xlu0 %v1078
  %v1080 = vpop.xlane.xlu0 %1079
  %v1081 = vsel %vm1053, %v677, 0.0
  %1082 = vadd.xlane.f32.xlu0 %v1081
  %v1083 = vpop.xlane.xlu0 %1082
  %v1084 = vsel %vm1053, %v678, 0.0
  %1085 = vadd.xlane.f32.xlu0 %v1084
  %v1086 = vpop.xlane.xlu0 %1085
  %v1087 = vsel %vm1053, %v679, 0.0
  %1088 = vadd.xlane.f32.xlu0 %v1087
  %v1089 = vpop.xlane.xlu0 %1088
  %v1090 = vsel %vm1053, %v680, 0.0
  %1091 = vadd.xlane.f32.xlu0 %v1090
  %v1092 = vpop.xlane.xlu0 %1091
  %v1093 = vsel %vm1053, %v681, 0.0
  %1094 = vadd.xlane.f32.xlu0 %v1093
  %v1095 = vpop.xlane.xlu0 %1094
  %v1096 = vsel %vm1053, %v682, 0.0
  %1097 = vadd.xlane.f32.xlu0 %v1096
  %v1098 = vpop.xlane.xlu0 %1097
  %v1099 = vsel %vm1053, %v683, 0.0
  %1100 = vadd.xlane.f32.xlu0 %v1099
  %v1101 = vpop.xlane.xlu0 %1100
  %v1102 = vsel %vm1053, %v684, 0.0
  %1103 = vadd.xlane.f32.xlu0 %v1102
  %v1104 = vpop.xlane.xlu0 %1103
  %v1105 = vsel %vm1053, %v685, 0.0
  %1106 = vadd.xlane.f32.xlu0 %v1105
  %v1107 = vpop.xlane.xlu0 %1106
  %v1108 = vsel %vm1053, %v686, 0.0
  %1109 = vadd.xlane.f32.xlu0 %v1108
  %v1110 = vpop.xlane.xlu0 %1109
  %v1111 = vsel %vm1053, %v687, 0.0
  %1112 = vadd.xlane.f32.xlu0 %v1111
  %v1113 = vpop.xlane.xlu0 %1112
  %v1114 = vsel %vm1053, %v688, 0.0
  %1115 = vadd.xlane.f32.xlu0 %v1114
  %v1116 = vpop.xlane.xlu0 %1115
  %v1117 = vsel %vm1053, %v689, 0.0
  %1118 = vadd.xlane.f32.xlu0 %v1117
  %v1119 = vpop.xlane.xlu0 %1118
  %v1120 = vsel %vm1053, %v690, 0.0
  %1121 = vadd.xlane.f32.xlu0 %v1120
  %v1122 = vpop.xlane.xlu0 %1121
  %v1123 = vsel %vm1053, %v691, 0.0
  %1124 = vadd.xlane.f32.xlu0 %v1123
  %v1125 = vpop.xlane.xlu0 %1124
  %v1126 = vsel %vm1053, %v692, 0.0
  %1127 = vadd.xlane.f32.xlu0 %v1126
  %v1128 = vpop.xlane.xlu0 %1127
  %v1129 = vsel %vm1053, %v693, 0.0
  %1130 = vadd.xlane.f32.xlu0 %v1129
  %v1131 = vpop.xlane.xlu0 %1130
  %v1132 = vsel %vm1053, %v694, 0.0
  %1133 = vadd.xlane.f32.xlu0 %v1132
  %v1134 = vpop.xlane.xlu0 %1133
  %v1135 = vsel %vm1053, %v695, 0.0
  %1136 = vadd.xlane.f32.xlu0 %v1135
  %v1137 = vpop.xlane.xlu0 %1136
  %v1138 = vsel %vm1053, %v696, 0.0
  %1139 = vadd.xlane.f32.xlu0 %v1138
  %v1140 = vpop.xlane.xlu0 %1139
  %v1141 = vsel %vm1053, %v697, 0.0
  %1142 = vadd.xlane.f32.xlu0 %v1141
  %v1143 = vpop.xlane.xlu0 %1142
  %v1144 = vsel %vm1053, %v698, 0.0
  %1145 = vadd.xlane.f32.xlu0 %v1144
  %v1146 = vpop.xlane.xlu0 %1145
  %v1147 = vsel %vm1053, %v699, 0.0
  %1148 = vadd.xlane.f32.xlu0 %v1147
  %v1149 = vpop.xlane.xlu0 %1148
  %v1150 = vsel %vm1053, %v700, 0.0
  %1151 = vadd.xlane.f32.xlu0 %v1150
  %v1152 = vpop.xlane.xlu0 %1151
  %v1153 = vsel %vm1053, %v701, 0.0
  %1154 = vadd.xlane.f32.xlu0 %v1153
  %v1155 = vpop.xlane.xlu0 %1154
  %v1156 = vsel %vm1053, %v702, 0.0
  %1157 = vadd.xlane.f32.xlu0 %v1156
  %v1158 = vpop.xlane.xlu0 %1157
  %v1159 = vsel %vm1053, %v703, 0.0
  %1160 = vadd.xlane.f32.xlu0 %v1159
  %v1161 = vpop.xlane.xlu0 %1160
  %v1162 = vsel %vm1053, %v704, 0.0
  %1163 = vadd.xlane.f32.xlu0 %v1162
  %v1164 = vpop.xlane.xlu0 %1163
  %v1165 = vsel %vm1053, %v705, 0.0
  %1166 = vadd.xlane.f32.xlu0 %v1165
  %v1167 = vpop.xlane.xlu0 %1166
  %v1168 = vsel %vm1053, %v706, 0.0
  %1169 = vadd.xlane.f32.xlu0 %v1168
  %v1170 = vpop.xlane.xlu0 %1169
  %v1171 = vsel %vm1053, %v707, 0.0
  %1172 = vadd.xlane.f32.xlu0 %v1171
  %v1173 = vpop.xlane.xlu0 %1172
  %v1174 = vsel %vm1053, %v708, 0.0
  %1175 = vadd.xlane.f32.xlu0 %v1174
  %v1176 = vpop.xlane.xlu0 %1175
  %v1177 = vsel %vm1053, %v709, 0.0
  %1178 = vadd.xlane.f32.xlu0 %v1177
  %v1179 = vpop.xlane.xlu0 %1178
  %v1180 = vsel %vm1053, %v710, 0.0
  %1181 = vadd.xlane.f32.xlu0 %v1180
  %v1182 = vpop.xlane.xlu0 %1181
  %v1183 = vsel %vm1053, %v711, 0.0
  %1184 = vadd.xlane.f32.xlu0 %v1183
  %v1185 = vpop.xlane.xlu0 %1184
  %v1186 = vsel %vm1053, %v712, 0.0
  %1187 = vadd.xlane.f32.xlu0 %v1186
  %v1188 = vpop.xlane.xlu0 %1187
  %v1189 = vsel %vm1053, %v713, 0.0
  %1190 = vadd.xlane.f32.xlu0 %v1189
  %v1191 = vpop.xlane.xlu0 %1190
  %v1192 = vsel %vm1053, %v714, 0.0
  %1193 = vadd.xlane.f32.xlu0 %v1192
  %v1194 = vpop.xlane.xlu0 %1193
  %v1195 = vsel %vm1053, %v715, 0.0
  %1196 = vadd.xlane.f32.xlu0 %v1195
  %v1197 = vpop.xlane.xlu0 %1196
  %v1198 = vsel %vm1053, %v716, 0.0
  %1199 = vadd.xlane.f32.xlu0 %v1198
  %v1200 = vpop.xlane.xlu0 %1199
  %v1201 = vsel %vm1053, %v717, 0.0
  %1202 = vadd.xlane.f32.xlu0 %v1201
  %v1203 = vpop.xlane.xlu0 %1202
  %v1204 = vsel %vm1053, %v718, 0.0
  %1205 = vadd.xlane.f32.xlu0 %v1204
  %v1206 = vpop.xlane.xlu0 %1205
  %v1207 = vsel %vm1053, %v719, 0.0
  %1208 = vadd.xlane.f32.xlu0 %v1207
  %v1209 = vpop.xlane.xlu0 %1208
  %v1210 = vsel %vm1053, %v720, 0.0
  %1211 = vadd.xlane.f32.xlu0 %v1210
  %v1212 = vpop.xlane.xlu0 %1211
  %v1213 = vsel %vm1053, %v721, 0.0
  %1214 = vadd.xlane.f32.xlu0 %v1213
  %v1215 = vpop.xlane.xlu0 %1214
  %v1216 = vsel %vm1053, %v722, 0.0
  %1217 = vadd.xlane.f32.xlu0 %v1216
  %v1218 = vpop.xlane.xlu0 %1217
  %v1219 = vsel %vm1053, %v723, 0.0
  %1220 = vadd.xlane.f32.xlu0 %v1219
  %v1221 = vpop.xlane.xlu0 %1220
  %v1222 = vsel %vm1053, %v724, 0.0
  %1223 = vadd.xlane.f32.xlu0 %v1222
  %v1224 = vpop.xlane.xlu0 %1223
  %v1225 = vsel %vm1053, %v725, 0.0
  %1226 = vadd.xlane.f32.xlu0 %v1225
  %v1227 = vpop.xlane.xlu0 %1226
  %v1228 = vsel %vm1053, %v726, 0.0
  %1229 = vadd.xlane.f32.xlu0 %v1228
  %v1230 = vpop.xlane.xlu0 %1229
  %v1231 = vsel %vm1053, %v727, 0.0
  %1232 = vadd.xlane.f32.xlu0 %v1231
  %v1233 = vpop.xlane.xlu0 %1232
  %v1234 = vsel %vm1053, %v728, 0.0
  %1235 = vadd.xlane.f32.xlu0 %v1234
  %v1236 = vpop.xlane.xlu0 %1235
  %v1237 = vsel %vm1053, %v729, 0.0
  %1238 = vadd.xlane.f32.xlu0 %v1237
  %v1239 = vpop.xlane.xlu0 %1238
  %v1240 = vsel %vm1053, %v730, 0.0
  %1241 = vadd.xlane.f32.xlu0 %v1240
  %v1242 = vpop.xlane.xlu0 %1241
  %v1243 = vsel %vm1053, %v731, 0.0
  %1244 = vadd.xlane.f32.xlu0 %v1243
  %v1245 = vpop.xlane.xlu0 %1244
  %v1246 = vrcp.pop 64.0
  %v1247 = vmul.f32 %v1056, %v1246
  %v1248 = vmul.f32 %v1059, %v1246
  %v1249 = vmul.f32 %v1062, %v1246
  %v1250 = vmul.f32 %v1065, %v1246
  %v1251 = vmul.f32 %v1068, %v1246
  %v1252 = vmul.f32 %v1071, %v1246
  %v1253 = vmul.f32 %v1074, %v1246
  %v1254 = vmul.f32 %v1077, %v1246
  %v1255 = vmul.f32 %v1080, %v1246
  %v1256 = vmul.f32 %v1083, %v1246
  %v1257 = vmul.f32 %v1086, %v1246
  %v1258 = vmul.f32 %v1089, %v1246
  %v1259 = vmul.f32 %v1092, %v1246
  %v1260 = vmul.f32 %v1095, %v1246
  %v1261 = vmul.f32 %v1098, %v1246
  %v1262 = vmul.f32 %v1101, %v1246
  %v1263 = vmul.f32 %v1104, %v1246
  %v1264 = vmul.f32 %v1107, %v1246
  %v1265 = vmul.f32 %v1110, %v1246
  %v1266 = vmul.f32 %v1113, %v1246
  %v1267 = vmul.f32 %v1116, %v1246
  %v1268 = vmul.f32 %v1119, %v1246
  %v1269 = vmul.f32 %v1122, %v1246
  %v1270 = vmul.f32 %v1125, %v1246
  %v1271 = vmul.f32 %v1128, %v1246
  %v1272 = vmul.f32 %v1131, %v1246
  %v1273 = vmul.f32 %v1134, %v1246
  %v1274 = vmul.f32 %v1137, %v1246
  %v1275 = vmul.f32 %v1140, %v1246
  %v1276 = vmul.f32 %v1143, %v1246
  %v1277 = vmul.f32 %v1146, %v1246
  %v1278 = vmul.f32 %v1149, %v1246
  %v1279 = vmul.f32 %v1152, %v1246
  %v1280 = vmul.f32 %v1155, %v1246
  %v1281 = vmul.f32 %v1158, %v1246
  %v1282 = vmul.f32 %v1161, %v1246
  %v1283 = vmul.f32 %v1164, %v1246
  %v1284 = vmul.f32 %v1167, %v1246
  %v1285 = vmul.f32 %v1170, %v1246
  %v1286 = vmul.f32 %v1173, %v1246
  %v1287 = vmul.f32 %v1176, %v1246
  %v1288 = vmul.f32 %v1179, %v1246
  %v1289 = vmul.f32 %v1182, %v1246
  %v1290 = vmul.f32 %v1185, %v1246
  %v1291 = vmul.f32 %v1188, %v1246
  %v1292 = vmul.f32 %v1191, %v1246
  %v1293 = vmul.f32 %v1194, %v1246
  %v1294 = vmul.f32 %v1197, %v1246
  %v1295 = vmul.f32 %v1200, %v1246
  %v1296 = vmul.f32 %v1203, %v1246
  %v1297 = vmul.f32 %v1206, %v1246
  %v1298 = vmul.f32 %v1209, %v1246
  %v1299 = vmul.f32 %v1212, %v1246
  %v1300 = vmul.f32 %v1215, %v1246
  %v1301 = vmul.f32 %v1218, %v1246
  %v1302 = vmul.f32 %v1221, %v1246
  %v1303 = vmul.f32 %v1224, %v1246
  %v1304 = vmul.f32 %v1227, %v1246
  %v1305 = vmul.f32 %v1230, %v1246
  %v1306 = vmul.f32 %v1233, %v1246
  %v1307 = vmul.f32 %v1236, %v1246
  %v1308 = vmul.f32 %v1239, %v1246
  %v1309 = vmul.f32 %v1242, %v1246
  %v1310 = vmul.f32 %v1245, %v1246
  %vm1311 = vcmask 7168
  %1312 = vst.msk [vmem:[%s4] sm:$0xff] %vm1311, %v1247
  %1313 = vst.msk [vmem:[%s4 + $0x8] sm:$0xff] %vm1311, %v1248
  %1314 = vst.msk [vmem:[%s4 + $0x10] sm:$0xff] %vm1311, %v1249
  %1315 = vst.msk [vmem:[%s4 + $0x18] sm:$0xff] %vm1311, %v1250
  %1316 = vst.msk [vmem:[%s4 + $0x20] sm:$0xff] %vm1311, %v1251
  %1317 = vst.msk [vmem:[%s4 + $0x28] sm:$0xff] %vm1311, %v1252
  %1318 = vst.msk [vmem:[%s4 + $0x30] sm:$0xff] %vm1311, %v1253
  %1319 = vst.msk [vmem:[%s4 + $0x38] sm:$0xff] %vm1311, %v1254
  %1320 = vst.msk [vmem:[%s4 + $0x40] sm:$0xff] %vm1311, %v1255
  %1321 = vst.msk [vmem:[%s4 + $0x48] sm:$0xff] %vm1311, %v1256
  %1322 = vst.msk [vmem:[%s4 + $0x50] sm:$0xff] %vm1311, %v1257
  %1323 = vst.msk [vmem:[%s4 + $0x58] sm:$0xff] %vm1311, %v1258
  %1324 = vst.msk [vmem:[%s4 + $0x60] sm:$0xff] %vm1311, %v1259
  %1325 = vst.msk [vmem:[%s4 + $0x68] sm:$0xff] %vm1311, %v1260
  %1326 = vst.msk [vmem:[%s4 + $0x70] sm:$0xff] %vm1311, %v1261
  %1327 = vst.msk [vmem:[%s4 + $0x78] sm:$0xff] %vm1311, %v1262
  %1328 = vst.msk [vmem:[%s4 + $0x80] sm:$0xff] %vm1311, %v1263
  %1329 = vst.msk [vmem:[%s4 + $0x88] sm:$0xff] %vm1311, %v1264
  %1330 = vst.msk [vmem:[%s4 + $0x90] sm:$0xff] %vm1311, %v1265
  %1331 = vst.msk [vmem:[%s4 + $0x98] sm:$0xff] %vm1311, %v1266
  %1332 = vst.msk [vmem:[%s4 + $0xa0] sm:$0xff] %vm1311, %v1267
  %1333 = vst.msk [vmem:[%s4 + $0xa8] sm:$0xff] %vm1311, %v1268
  %1334 = vst.msk [vmem:[%s4 + $0xb0] sm:$0xff] %vm1311, %v1269
  %1335 = vst.msk [vmem:[%s4 + $0xb8] sm:$0xff] %vm1311, %v1270
  %1336 = vst.msk [vmem:[%s4 + $0xc0] sm:$0xff] %vm1311, %v1271
  %1337 = vst.msk [vmem:[%s4 + $0xc8] sm:$0xff] %vm1311, %v1272
  %1338 = vst.msk [vmem:[%s4 + $0xd0] sm:$0xff] %vm1311, %v1273
  %1339 = vst.msk [vmem:[%s4 + $0xd8] sm:$0xff] %vm1311, %v1274
  %1340 = vst.msk [vmem:[%s4 + $0xe0] sm:$0xff] %vm1311, %v1275
  %1341 = vst.msk [vmem:[%s4 + $0xe8] sm:$0xff] %vm1311, %v1276
  %1342 = vst.msk [vmem:[%s4 + $0xf0] sm:$0xff] %vm1311, %v1277
  %1343 = vst.msk [vmem:[%s4 + $0xf8] sm:$0xff] %vm1311, %v1278
  %1344 = vst.msk [vmem:[%s4 + $0x100] sm:$0xff] %vm1311, %v1279
  %1345 = vst.msk [vmem:[%s4 + $0x108] sm:$0xff] %vm1311, %v1280
  %1346 = vst.msk [vmem:[%s4 + $0x110] sm:$0xff] %vm1311, %v1281
  %1347 = vst.msk [vmem:[%s4 + $0x118] sm:$0xff] %vm1311, %v1282
  %1348 = vst.msk [vmem:[%s4 + $0x120] sm:$0xff] %vm1311, %v1283
  %1349 = vst.msk [vmem:[%s4 + $0x128] sm:$0xff] %vm1311, %v1284
  %1350 = vst.msk [vmem:[%s4 + $0x130] sm:$0xff] %vm1311, %v1285
  %1351 = vst.msk [vmem:[%s4 + $0x138] sm:$0xff] %vm1311, %v1286
  %1352 = vst.msk [vmem:[%s4 + $0x140] sm:$0xff] %vm1311, %v1287
  %1353 = vst.msk [vmem:[%s4 + $0x148] sm:$0xff] %vm1311, %v1288
  %1354 = vst.msk [vmem:[%s4 + $0x150] sm:$0xff] %vm1311, %v1289
  %1355 = vst.msk [vmem:[%s4 + $0x158] sm:$0xff] %vm1311, %v1290
  %1356 = vst.msk [vmem:[%s4 + $0x160] sm:$0xff] %vm1311, %v1291
  %1357 = vst.msk [vmem:[%s4 + $0x168] sm:$0xff] %vm1311, %v1292
  %1358 = vst.msk [vmem:[%s4 + $0x170] sm:$0xff] %vm1311, %v1293
  %1359 = vst.msk [vmem:[%s4 + $0x178] sm:$0xff] %vm1311, %v1294
  %1360 = vst.msk [vmem:[%s4 + $0x180] sm:$0xff] %vm1311, %v1295
  %1361 = vst.msk [vmem:[%s4 + $0x188] sm:$0xff] %vm1311, %v1296
  %1362 = vst.msk [vmem:[%s4 + $0x190] sm:$0xff] %vm1311, %v1297
  %1363 = vst.msk [vmem:[%s4 + $0x198] sm:$0xff] %vm1311, %v1298
  %1364 = vst.msk [vmem:[%s4 + $0x1a0] sm:$0xff] %vm1311, %v1299
  %1365 = vst.msk [vmem:[%s4 + $0x1a8] sm:$0xff] %vm1311, %v1300
  %1366 = vst.msk [vmem:[%s4 + $0x1b0] sm:$0xff] %vm1311, %v1301
  %1367 = vst.msk [vmem:[%s4 + $0x1b8] sm:$0xff] %vm1311, %v1302
  %1368 = vst.msk [vmem:[%s4 + $0x1c0] sm:$0xff] %vm1311, %v1303
  %1369 = vst.msk [vmem:[%s4 + $0x1c8] sm:$0xff] %vm1311, %v1304
  %1370 = vst.msk [vmem:[%s4 + $0x1d0] sm:$0xff] %vm1311, %v1305
  %1371 = vst.msk [vmem:[%s4 + $0x1d8] sm:$0xff] %vm1311, %v1306
  %1372 = vst.msk [vmem:[%s4 + $0x1e0] sm:$0xff] %vm1311, %v1307
  %1373 = vst.msk [vmem:[%s4 + $0x1e8] sm:$0xff] %vm1311, %v1308
  %1374 = vst.msk [vmem:[%s4 + $0x1f0] sm:$0xff] %vm1311, %v1309
  %1375 = vst.msk [vmem:[%s4 + $0x1f8] sm:$0xff] %vm1311, %v1310
  // Predicated region
  $region14: #{tpu_custom_call.1} parent=0 // pred_check
    _
  $region15: #{tpu_custom_call.1} parent=0 // pred_check_branch
    %1377 = sbr.rel (0) target = $region17
  $region16: #{tpu_custom_call.1} parent=0 // pred_region
    _
  $region17: #{tpu_custom_call.1} parent=0 // pred_fallthru
    _
  // Predicated region
  $region18: #{tpu_custom_call.1} parent=0 // pred_check
    _
  $region19: #{tpu_custom_call.1} parent=0 // pred_check_branch
    %1379 = sbr.rel (0) target = $region21
  $region20: #{tpu_custom_call.1} parent=0 // pred_region
    _
  $region21: #{tpu_custom_call.1} parent=0 // pred_fallthru
    _
  // Predicated region
  $region22: #{tpu_custom_call.1} parent=0 // pred_check
    _
  $region23: #{tpu_custom_call.1} parent=0 // pred_check_branch
    %1381 = sbr.rel (0) target = $region25
  $region24: #{tpu_custom_call.1} parent=0 // pred_region
    _
  $region25: #{tpu_custom_call.1} parent=0 // pred_fallthru
    _
  // Predicated region
  $region26: #{tpu_custom_call.1} parent=0 // pred_check
    _
  $region27: #{tpu_custom_call.1} parent=0 // pred_check_branch
    %1383 = sbr.rel (0) target = $region29
  $region28: #{tpu_custom_call.1} parent=0 // pred_region
    _
  $region29: #{tpu_custom_call.1} parent=0 // pred_fallthru
    _

</llo_original>
